<compile_context>
chip_gen: v7x
topology: tpu7x:2x2x1
jax: 0.10.0
libtpu: 0.0.40
codegen_flags: <defaults>
</compile_context>

<pallas_src>
import functools

import jax
import jax.numpy as jnp
from jax.experimental import pallas as pl
from jax.experimental.pallas import tpu as pltpu


# 9 shift directions: out[y, x] = in[y + dy, x + dx] (zero outside the image).
_DIRS = ((-1, -1), (-1, 0), (-1, 1),
         (0, -1),  (0, 0),  (0, 1),
         (1, -1),  (1, 0),  (1, 1))


def _group_starts(c):
    """Channel-group boundaries: group g covers channels [ceil(g*c/9), ceil((g+1)*c/9))."""
    return tuple(-(-(g * c) // 9) for g in range(10))


# ---------------------------------------------------------------------------
# pltpu.roll rotation-direction probe (guards against rotate sign convention).
# ---------------------------------------------------------------------------
_ROLL_LIKE_JNP = None


def _roll_matches_jnp_roll():
    """True if pltpu.roll(x, s)[i] == x[(i - s) % n] (i.e. jnp.roll semantics)."""
    global _ROLL_LIKE_JNP
    if _ROLL_LIKE_JNP is None:
        def kernel(x_ref, o_ref):
            o_ref[...] = pltpu.roll(x_ref[...], shift=1, axis=1)

        x = jnp.arange(8 * 128, dtype=jnp.float32).reshape(8, 128)
        y = jax.block_until_ready(
            pl.pallas_call(
                kernel, out_shape=jax.ShapeDtypeStruct((8, 128), jnp.float32))(x))
        v = float(y[0, 0])
        if v == float(x[0, 127]):
            _ROLL_LIKE_JNP = True
        elif v == float(x[0, 1]):
            _ROLL_LIKE_JNP = False
        else:
            raise RuntimeError(f"unexpected pltpu.roll semantics (probe={v})")
    return _ROLL_LIKE_JNP


# ---------------------------------------------------------------------------
# Fused kernel: shift1 -> 1x1 conv (+BN1, relu) -> shift2 -> 1x1 conv (+BN2)
#               -> + identity shortcut -> relu, on a (C_pad, B*HW_pad) VMEM tile.
# ---------------------------------------------------------------------------
def _fused_block_kernel(x_ref, smask_ref, w1_ref, b1_ref, w2_ref, b2_ref, o_ref, *,
                        W, starts, roll_like_jnp):
    C, L = x_ref.shape                          # (C_pad, B*HW_pad), lane-dense
    dt = x_ref.dtype

    # --- hoisted once, shared by BOTH shift stages -------------------------
    # Combined (channel-group AND spatial-edge) float masks per shift direction.
    # Spatial edge masks arrive precomputed from the host (no in-kernel div/mod).
    ch = jax.lax.broadcasted_iota(jnp.int32, (C, 1), 0)
    groups = []                                 # (lane offset, combined mask (C, L))
    for g, (dy, dx) in enumerate(_DIRS):
        cs, ce = starts[g], starts[g + 1]
        if ce <= cs:                            # empty group (C < 9)
            continue
        cmask = ((ch >= cs) & (ch < ce)).astype(dt)          # (C, 1)
        groups.append((dy * W + dx, cmask * smask_ref[g:g + 1, :]))

    def shift(v):
        """Per-channel-group zero-padded spatial shift of v (C, L) in dtype dt."""
        parts = []
        for off, mask in groups:
            if off == 0:
                rolled = v
            else:
                amt = (-off if roll_like_jnp else off) % L
                rolled = pltpu.roll(v, shift=amt, axis=1)    # XLU lane rotation
            parts.append(rolled * mask)         # disjoint masks -> sum == select
        while len(parts) > 1:                   # pairwise tree add, no serial chain
            nxt = [parts[i] + parts[i + 1] for i in range(0, len(parts) - 1, 2)]
            if len(parts) % 2:
                nxt.append(parts[-1])
            parts = nxt
        return parts[0]

    # --- conv1 (shift + 1x1, BN1 scale folded into w1) + bias + relu -------
    h = jnp.dot(w1_ref[...], shift(x_ref[...]),
                preferred_element_type=jnp.float32)          # (C, L) f32 accum
    h = jnp.maximum(h + b1_ref[...], 0.0)

    # --- conv2 (shift + 1x1, BN2 folded) + bias + identity shortcut + relu -
    acc = jnp.dot(w2_ref[...], shift(h.astype(dt)),          # shift in compute dtype
                  preferred_element_type=jnp.float32)
    acc = acc + b2_ref[...] + x_ref[...].astype(jnp.float32)  # re-read x (no pinned copy)
    o_ref[...] = jnp.maximum(acc, 0.0).astype(o_ref.dtype)


# ---------------------------------------------------------------------------
# Wrapper: parameter folding, padding/layout, tile choice + pallas_call
# ---------------------------------------------------------------------------
def fold_bn(gamma, beta, mean, var, eps=1e-5):
    scale = gamma / jnp.sqrt(var + eps)
    bias = beta - mean * scale
    return scale, bias


def _pick_images_per_step(N, C_pad, HW_pad, itemsize,
                          budget_bytes=24 * 1024 * 1024):
    """Images per grid step: widest lane axis that fits a conservative VMEM budget
    (safe on v7x's 64 MiB), keeping >=2 grid steps when possible so a v7x megacore
    can split the batch across its two TensorCores."""
    def footprint(b):
        lanes = b * HW_pad
        io = 2 * 2 * C_pad * lanes * itemsize       # double-buffered x + out blocks
        tmp = 14 * C_pad * lanes * 4                # masks / rolls / f32 accumulators
        return io + tmp
    divisors = [d for d in range(1, N + 1) if N % d == 0]
    fits = [d for d in divisors if footprint(d) <= budget_bytes] or [1]
    pref = [d for d in fits if N // d >= 2] or fits
    return max(pref)


def _dimension_semantics():
    """CORE_PARALLEL on v7x (2 TCs/chip); plain 'parallel' elsewhere."""
    try:
        kind = jax.devices()[0].device_kind.lower().replace(" ", "")
    except Exception:
        kind = ""
    core_parallel = getattr(pltpu, "CORE_PARALLEL", None)
    if core_parallel is not None and ("v7" in kind or "tpu7" in kind):
        return (core_parallel,)
    return ("parallel",)


def shift_basic_block_forward(x, p, *, compute_dtype=None):
    """x: (N, C, H, W); stride=1, in_planes == planes -> identity shortcut."""
    N, Cin, H, W = x.shape
    Cout = p["w1"].shape[1]
    assert Cin == Cout, "only the stride=1 / identity-shortcut config is implemented"
    HW = H * W
    dt = jnp.dtype(compute_dtype) if compute_dtype is not None else jnp.dtype(x.dtype)
    itemsize = dt.itemsize

    # Pad spatial to a lane multiple and channels to a sublane multiple so every
    # kernel load/store is lane-dense (unmasked vld/vst).
    HW_pad = 128 * pl.cdiv(HW, 128)
    sub = 8 if itemsize >= 4 else (16 if itemsize == 2 else 32)
    C_pad = sub * pl.cdiv(Cin, sub)

    scale1, bias1 = fold_bn(p["g1"], p["b1"], p["m1"], p["v1"])
    scale2, bias2 = fold_bn(p["g2"], p["b2"], p["m2"], p["v2"])

    # Fold BN scale into the transposed 1x1-conv weights: s * (W^T x) == (W*s)^T x.
    def pad_w(wt):                                            # (Cout, Cin) -> (C_pad, C_pad)
        return jnp.pad(wt, ((0, C_pad - Cout), (0, C_pad - Cin))).astype(dt)

    w1t = pad_w((p["w1"] * scale1[None, :]).T)
    w2t = pad_w((p["w2"] * scale2[None, :]).T)
    b1 = jnp.pad(bias1, (0, C_pad - Cout)).reshape(C_pad, 1).astype(jnp.float32)
    b2 = jnp.pad(bias2, (0, C_pad - Cout)).reshape(C_pad, 1).astype(jnp.float32)

    # Channel-major, lane-flattened activation layout: (C_pad, N * HW_pad).
    xr = x.reshape(N, Cin, HW)
    xr = jnp.pad(xr, ((0, 0), (0, C_pad - Cin), (0, HW_pad - HW)))
    xr = jnp.transpose(xr, (1, 0, 2)).reshape(C_pad, N * HW_pad).astype(dt)

    # Host-precomputed spatial edge masks, one row per shift direction, already
    # tiled across the N images (per-image geometry -> no cross-image leakage).
    lin = jnp.arange(HW_pad, dtype=jnp.int32)
    yy, xx = jnp.divmod(lin, W)
    rows = []
    for (dy, dx) in _DIRS:
        rows.append((lin < HW) & (yy + dy >= 0) & (yy + dy < H)
                    & (xx + dx >= 0) & (xx + dx < W))
    smask = jnp.tile(jnp.stack(rows).astype(dt), (1, N))      # (9, N*HW_pad)

    B = _pick_images_per_step(N, C_pad, HW_pad, itemsize)
    steps = N // B
    L = B * HW_pad

    cost = pl.CostEstimate(
        flops=4 * N * HW_pad * C_pad * C_pad,                 # two 1x1 convs
        transcendentals=0,
        bytes_accessed=(2 * C_pad * N * HW_pad * itemsize
                        + 9 * N * HW_pad * itemsize
                        + 2 * C_pad * C_pad * itemsize + 2 * C_pad * 4))

    kernel = functools.partial(
        _fused_block_kernel, W=W, starts=_group_starts(Cin),
        roll_like_jnp=_roll_matches_jnp_roll())

    def call(dim_sem):
        return pl.pallas_call(
            kernel,
            out_shape=jax.ShapeDtypeStruct((C_pad, N * HW_pad), dt),
            grid=(steps,),
            in_specs=[
                pl.BlockSpec((C_pad, L), lambda g: (0, g)),      # x (B images / step)
                pl.BlockSpec((9, L), lambda g: (0, g)),          # spatial edge masks
                pl.BlockSpec((C_pad, C_pad), lambda g: (0, 0)),  # w1 (BN1 folded)
                pl.BlockSpec((C_pad, 1), lambda g: (0, 0)),      # b1
                pl.BlockSpec((C_pad, C_pad), lambda g: (0, 0)),  # w2 (BN2 folded)
                pl.BlockSpec((C_pad, 1), lambda g: (0, 0)),      # b2
            ],
            out_specs=pl.BlockSpec((C_pad, L), lambda g: (0, g)),
            compiler_params=pltpu.CompilerParams(
                dimension_semantics=dim_sem,
                vmem_limit_bytes=32 * 1024 * 1024),
            cost_estimate=cost,
        )(xr, smask, w1t, b1, w2t, b2)

    dim_sem = _dimension_semantics()
    if dim_sem == ("parallel",):
        out2d = call(dim_sem)
    else:
        try:                                     # CORE_PARALLEL (v7x); fall back if rejected
            out2d = call(dim_sem)
            jax.block_until_ready(out2d)
        except Exception:
            out2d = call(("parallel",))

    out = out2d.reshape(C_pad, N, HW_pad)[:Cout, :, :HW]
    return jnp.transpose(out, (1, 0, 2)).reshape(N, Cout, H, W).astype(x.dtype)


# ---------------------------------------------------------------------------
# Pure-JAX reference (contiguous-group pad/slice shift)
# ---------------------------------------------------------------------------
def _shift_nchw_ref(x):
    N, C, H, W = x.shape
    starts = _group_starts(C)
    parts = []
    for g, (dy, dx) in enumerate(_DIRS):
        cs, ce = starts[g], starts[g + 1]
        if ce <= cs:
            continue
        xg = x[:, cs:ce, max(0, dy):H + min(0, dy), max(0, dx):W + min(0, dx)]
        parts.append(jnp.pad(xg, ((0, 0), (0, 0),
                                  (max(0, -dy), max(0, dy)),
                                  (max(0, -dx), max(0, dx)))))
    return jnp.concatenate(parts, axis=1)


def reference_forward(x, p):
    N, C, H, W = x.shape
    scale1, bias1 = fold_bn(p["g1"], p["b1"], p["m1"], p["v1"])
    scale2, bias2 = fold_bn(p["g2"], p["b2"], p["m2"], p["v2"])
    w1t = (p["w1"] * scale1[None, :]).T
    w2t = (p["w2"] * scale2[None, :]).T

    xs = _shift_nchw_ref(x).reshape(N, C, H * W)
    h = jnp.maximum(jnp.matmul(w1t, xs) + bias1[None, :, None], 0.0)
    hs = _shift_nchw_ref(h.reshape(N, C, H, W)).reshape(N, C, H * W)
    o = jnp.matmul(w2t, hs) + bias2[None, :, None] + x.reshape(N, C, H * W)
    return jnp.maximum(o, 0.0).reshape(N, C, H, W)


# ---------------------------------------------------------------------------
# Parameter init
# ---------------------------------------------------------------------------
def init_params(key, in_planes, planes):
    k1, k2, k3, k4, k5, k6 = jax.random.split(key, 6)
    p = {
        "w1": jax.random.normal(k1, (in_planes, planes), jnp.float32) * 0.1,
        "w2": jax.random.normal(k2, (planes, planes), jnp.float32) * 0.1,
        "g1": jax.random.uniform(k3, (planes,), jnp.float32, 0.5, 1.5),
        "b1": jax.random.normal(k4, (planes,), jnp.float32) * 0.1,
        "m1": jax.random.normal(k5, (planes,), jnp.float32) * 0.1,
        "v1": jax.random.uniform(k6, (planes,), jnp.float32, 0.5, 1.5),
    }
    k7, k8, k9, k10 = jax.random.split(k6, 4)
    p.update({
        "g2": jax.random.uniform(k7, (planes,), jnp.float32, 0.5, 1.5),
        "b2": jax.random.normal(k8, (planes,), jnp.float32) * 0.1,
        "m2": jax.random.normal(k9, (planes,), jnp.float32) * 0.1,
        "v2": jax.random.uniform(k10, (planes,), jnp.float32, 0.5, 1.5),
    })
    return p


if __name__ == "__main__":
    key = jax.random.PRNGKey(0)
    kx1, kx2, kp1, kp2 = jax.random.split(key, 4)

    # Config 1: aligned shapes; batched lane axis (2 images per grid step, 512 lanes).
    N, C, H, W = 4, 32, 16, 16
    x = jax.random.normal(kx1, (N, C, H, W), jnp.float32)
    params = init_params(kp1, C, C)

    out = jax.block_until_ready(shift_basic_block_forward(x, params))
    ref = jax.block_until_ready(reference_forward(x, params))
    assert out.shape == (N, C, H, W) and out.dtype == x.dtype
    assert jnp.allclose(out, ref, atol=1e-3, rtol=1e-3), \
        float(jnp.max(jnp.abs(out - ref)))

    # bfloat16 compute path (halves shift/matmul operand bytes on v6e/v7x); f32 accum.
    out_bf16 = jax.block_until_ready(
        shift_basic_block_forward(x, params, compute_dtype=jnp.bfloat16))
    assert jnp.allclose(out_bf16.astype(jnp.float32), ref, atol=1e-1, rtol=1e-1)

    # Config 2: unaligned H*W (81 -> 128) and channels (20 -> 24) exercise padding.
    N2, C2, H2, W2 = 2, 20, 9, 9
    x2 = jax.random.normal(kx2, (N2, C2, H2, W2), jnp.float32)
    params2 = init_params(kp2, C2, C2)
    out2 = jax.block_until_ready(shift_basic_block_forward(x2, params2))
    ref2 = jax.block_until_ready(reference_forward(x2, params2))
    assert jnp.allclose(out2, ref2, atol=1e-3, rtol=1e-3), \
        float(jnp.max(jnp.abs(out2 - ref2)))

    print("KERNEL_OK")
</pallas_src>

<mosaic_0001>
module attributes {stable_mosaic.version = 11 : i64} {
  func.func @kernel(%arg0: memref<8x128xf32, #tpu.memory_space<vmem>>, %arg1: memref<8x128xf32, #tpu.memory_space<vmem>>) attributes {dimension_semantics = [], scalar_prefetch = 0 : i64, scratch_operands = 0 : i64, tpu.core_type = #tpu.core_type<tc>} {
    %c0 = arith.constant 0 : index
    %c0_0 = arith.constant 0 : index
    %0 = vector.load %arg0[%c0, %c0_0] : memref<8x128xf32, #tpu.memory_space<vmem>>, vector<8x128xf32>
    %c1_i32 = arith.constant 1 : i32
    %1 = tpu.dynamic_rotate %0 by %c1_i32 dim 1 : vector<8x128xf32>, i32 -> vector<8x128xf32>
    %c0_1 = arith.constant 0 : index
    %c0_2 = arith.constant 0 : index
    %2 = vector.load %arg1[%c0_1, %c0_2] : memref<8x128xf32, #tpu.memory_space<vmem>>, vector<8x128xf32>
    tpu.vector_store %arg1[%c0_1, %c0_2], %1 {strides = array<i32>} : memref<8x128xf32, #tpu.memory_space<vmem>>, vector<8x128xf32>,
    return
  }
}

</mosaic_0001>

<llo_original>
// kernel: tpu_custom_call.1
$region0: #{tpu_custom_call.1}
  #allocation0 [shape = 'u32[]', space=smem, size = 0x4, offset = 0x4, fixed_abs, tag = 'smem constant byte address 0x4 - core index']
  #allocation1 [shape = 'u32[144,128]{1,0:T(1,128)}', space=vmem, size = 0x12000, scoped, tag = 'internal scratch']
  %s0 = inlined_call_operand.hbm [shape: f32[8,128], index: 0, kind: input, shape index: {}]
  %s1 = inlined_call_operand.hbm [shape: f32[8,128], index: 1, kind: output, shape index: {}]
  %s2 = sld [smem:[#allocation0]]
  $region18: #{tpu_custom_call.1} parent=0
    _
  %s4 = ssub.s32 1, %s2
  %s5 = scalar_select 0, %s4, %s2
  $region1: #{tpu_custom_call.1} parent=0
    #allocation2 [shape = 'u8[4096]{0}', space=vmem, size = 0x1000, scoped, tag = 'input window, operand 0, single buffered']
    #allocation3 [shape = 's32[1]{0}', space=sflag, size = 0x4, scoped, tag = 'scoped memory for tpu_custom_call.1']
    #allocation4 [shape = 's32[1]{0}', space=sflag, size = 0x4, scoped, tag = 'scoped memory for tpu_custom_call.1']
    #allocation5 [shape = 'u8[4096]{0}', space=vmem, size = 0x1000, scoped, tag = 'output window, operand 0, single buffered']
    %6 = vsyncpa [#allocation3], 0
    %7 = vsyncpa [#allocation4], 0
    // Predicated region
    $region2: #{tpu_custom_call.1} parent=1 // pred_check
      _
    $region3: #{tpu_custom_call.1} parent=1 // pred_check_branch
      %9 = sbr.rel (0) target = $region5
    $region4: #{tpu_custom_call.1} parent=1 // pred_region
      %s11 = ssub.s32 128, 128
      %12 = vsyncadd [#allocation3], %s11
      %s14 = sshll.u32 [#allocation2], 4
      %s15 = int_to_ptr.vmem [resolvable:$true] %s14
      %17 = dma.hbm_to_vmem [thread:$0]  %s0, 128, %s15, [#allocation3]
    $region5: #{tpu_custom_call.1} parent=1 // pred_fallthru
      _
    // Predicated region
    $region6: #{tpu_custom_call.1} parent=1 // pred_check
      _
    $region7: #{tpu_custom_call.1} parent=1 // pred_check_branch
      %19 = sbr.rel (0) target = $region9
    $region8: #{tpu_custom_call.1} parent=1 // pred_region
      %20 = dma.done [#allocation3], 128
    $region9: #{tpu_custom_call.1} parent=1 // pred_fallthru
      _
    %v21 = vld [vmem:[#allocation2] sm:$0xff]
    %22 = vrot.lane.b32.xlu0 %v21, 1
    %v23 = vpop.permute.xlu0 %22
    %24 = vst [vmem:[#allocation5] sm:$0xff] %v23
    // Predicated region
    $region10: #{tpu_custom_call.1} parent=1 // pred_check
      _
    $region11: #{tpu_custom_call.1} parent=1 // pred_check_branch
      %26 = sbr.rel (0) target = $region13
    $region12: #{tpu_custom_call.1} parent=1 // pred_region
      %s28 = ssub.s32 128, 128
      %29 = vsyncadd [#allocation4], %s28
      %s31 = sshll.u32 [#allocation5], 4
      %s32 = int_to_ptr.vmem [resolvable:$true] %s31
      %34 = dma.vmem_to_hbm [thread:$0]  %s32, 128, %s1, [#allocation4]
    $region13: #{tpu_custom_call.1} parent=1 // pred_fallthru
      _
    // Predicated region
    $region14: #{tpu_custom_call.1} parent=1 // pred_check
      _
    $region15: #{tpu_custom_call.1} parent=1 // pred_check_branch
      %36 = sbr.rel (0) target = $region17
    $region16: #{tpu_custom_call.1} parent=1 // pred_region
      %37 = dma.done [#allocation4], 128
    $region17: #{tpu_custom_call.1} parent=1 // pred_fallthru
      _
    %38 = vsyncpa [#allocation3], 1
    %39 = vsyncpa [#allocation4], 1

</llo_original>
